<compile_context>
chip_gen: v6e
topology: v6e:2x2x1
jax: 0.10.0
libtpu: 0.0.40
codegen_flags: <defaults>
</compile_context>

<pallas_src>
import numpy as np
import jax
import jax.numpy as jnp
from jax.experimental import pallas as pl
from jax.experimental.pallas import tpu as pltpu

# ---------------- model hyper-params (small synthetic config) ----------------
B = 2              # batch
SLOT_DIM = 4       # args.model.slot_dim
N_AGENTS = 3       # number of agents (second spatial axis)
T = 8              # time length == args.model.temporal_input_dim
CONTXT_K = 2       # args.model.contxt_k
RULE_ATTN_DK = 16  # args.model.rule_attn_dk (embedding param, unused in forward)
TEMPORAL_OUT = 12

C_OBS = SLOT_DIM                              # 4
C_CTX = SLOT_DIM * CONTXT_K                   # 8
C_COMB = SLOT_DIM * (CONTXT_K + 1)            # 12
C_ACT = C_OBS + C_CTX + C_OBS                 # 16 packed rows: obs | ctx | noise
BN = B * N_AGENTS                             # 6 samples
ROWS = BN * T                                 # 48 lane columns = (sample, t)
OUT_ROWS = BN * TEMPORAL_OUT                  # 72 lane columns = (sample, out_ch)
SP_K = 3 * C_COMB + 1                         # 37 spatial K (3 taps + ones/bias row)
WT_ROWS = 6 * ROWS + 1                        # 289 temporal slab rows (6 blocks + bias)

_FLOPS = 2 * (4 * SLOT_DIM * SP_K * ROWS + 6 * SLOT_DIM * ROWS * OUT_ROWS)
_BYTES = 4 * (1 + C_ACT * ROWS + 4 * SLOT_DIM * SP_K + WT_ROWS * OUT_ROWS
              + SLOT_DIM * OUT_ROWS)


# ------------------------------- Pallas kernel -------------------------------
def rule_network_kernel(scal_ref,   # SMEM (1,)  : w_noise
                        act_ref,    # VMEM [16,48]: obs(0:4) | ctx(4:12) | noise(12:16)
                        ws_ref,     # VMEM [16,37]: spatial weights, bias in col 36
                        wt_ref,     # VMEM [289,72]: temporal weights, bias in row 288
                        out_ref):   # VMEM [4,72] : rows = slot d, cols = (sample, out_ch)
    w_noise = scal_ref[0]

    act = act_ref[...]                                   # [16, 48]
    obs = act[:C_OBS]                                    # [4, 48]
    ctx = act[C_OBS:C_OBS + C_CTX]                       # [8, 48]
    nz = act[C_OBS + C_CTX:]                             # [4, 48]

    # noise injection: obs + noise*w ; contxt + noise.repeat(contxt_k)*w
    nzw = nz * w_noise
    comb = jnp.concatenate(
        [obs + nzw, ctx + jnp.concatenate([nzw] * CONTXT_K, axis=0)], axis=0)  # [12,48]

    # ---- spatial stage: one [16,37]x[37,48] matmul covers conv3 + conv1 of
    #      both branches (+ their biases via the ones row). Taps shift t (lane
    #      axis); per-sample 'same' padding emulated by boundary masks.
    t_idx = jax.lax.broadcasted_iota(jnp.int32, (C_COMB, ROWS), 1) % T
    zc = jnp.zeros((C_COMB, 1), jnp.float32)
    comb_prev = jnp.where(t_idx != 0,
                          jnp.concatenate([zc, comb[:, :-1]], axis=1), 0.0)
    comb_next = jnp.where(t_idx != T - 1,
                          jnp.concatenate([comb[:, 1:], zc], axis=1), 0.0)
    ones_row = jnp.ones((1, ROWS), jnp.float32)
    x_stack = jnp.concatenate([comb_prev, comb, comb_next, ones_row], axis=0)  # [37,48]

    y = jnp.dot(ws_ref[...], x_stack, preferred_element_type=jnp.float32)      # [16,48]
    # rows 0:8 = conv3 (indiv, social), rows 8:16 = residual conv1 (indiv, social)
    sp = jnp.maximum(y[:2 * SLOT_DIM], 0.0) + y[2 * SLOT_DIM:]                 # [8,48]

    # ---- temporal stage: six tap-wise [4,48]x[48,72] matmuls accumulated into
    #      a lane-dense [4,72] result (no cross-branch waste, no wide concats).
    #      Taps shift d (sublane axis); feature-edge 'same' padding via masks.
    d_idx = jax.lax.broadcasted_iota(jnp.int32, (2 * SLOT_DIM, ROWS), 0) % SLOT_DIM
    zr = jnp.zeros((1, ROWS), jnp.float32)
    sp_prev = jnp.where(d_idx != 0,
                        jnp.concatenate([zr, sp[:-1]], axis=0), 0.0)
    sp_next = jnp.where(d_idx != SLOT_DIM - 1,
                        jnp.concatenate([sp[1:], zr], axis=0), 0.0)

    blocks = (sp_prev[:SLOT_DIM], sp[:SLOT_DIM], sp_next[:SLOT_DIM],     # indiv taps
              sp_prev[SLOT_DIM:], sp[SLOT_DIM:], sp_next[SLOT_DIM:])     # social taps
    acc = jnp.dot(blocks[0], wt_ref[0:ROWS, :], preferred_element_type=jnp.float32)
    for k in range(1, 6):
        acc = acc + jnp.dot(blocks[k], wt_ref[k * ROWS:(k + 1) * ROWS, :],
                            preferred_element_type=jnp.float32)
    out_ref[...] = acc + wt_ref[6 * ROWS:6 * ROWS + 1, :]                      # [4,72]


# -------------------- one-time host-side weight packing ----------------------
def _conv3_rows(w3):
    # torch Conv1d weight [4, Cin, 3] -> [4, 3*C_COMB] rows, cols = (tap, channel)
    cin = w3.shape[1]
    w = jnp.transpose(w3, (0, 2, 1))                          # [4, 3, Cin]
    w = jnp.pad(w, ((0, 0), (0, 0), (0, C_COMB - cin)))        # indiv only sees obs chans
    return w.reshape(SLOT_DIM, 3 * C_COMB)


def _conv1_rows(w1):
    # torch Conv1d weight [4, Cin, 1] -> centre-tap-only [4, 3*C_COMB]
    cin = w1.shape[1]
    w = jnp.pad(w1[:, :, 0], ((0, 0), (0, C_COMB - cin)))
    z = jnp.zeros((SLOT_DIM, C_COMB), jnp.float32)
    return jnp.concatenate([z, w, z], axis=1)


def _temporal_block(w3, w1, scale):
    # [12, T, 3] conv3 + [12, T, 1] conv1 -> [3*BN*T, BN*12] block-diag over samples,
    # residual conv1 folded into the centre tap and branch scalar pre-applied (exact).
    w = jnp.transpose(w3, (2, 1, 0))                          # [3, T, 12]  (tap, t, o)
    w = w.at[1].add(w1[:, :, 0].T)
    w = w * scale
    eye = jnp.eye(BN, dtype=jnp.float32)
    return jnp.concatenate([jnp.kron(eye, w[k]) for k in range(3)], axis=0)    # [144,72]


def pack_rule_network_params(params):
    """One-time weight packing; keep this OUT of the per-step hot path."""
    # spatial slab [16, 37]: rows = indiv conv3 | social conv3 | indiv conv1 | social conv1
    ws_rows = jnp.concatenate([
        _conv3_rows(params["si_w"]),
        _conv3_rows(params["ss_w"]),
        _conv1_rows(params["sir_w"]),
        _conv1_rows(params["ssr_w"]),
    ], axis=0)
    bs_col = jnp.concatenate([params["si_b"], params["ss_b"],
                              params["sir_b"], params["ssr_b"]]).reshape(4 * SLOT_DIM, 1)
    ws_slab = jnp.concatenate([ws_rows, bs_col], axis=1).astype(jnp.float32)   # [16,37]

    # temporal slab [289, 72]: rows 0:144 indiv taps, 144:288 social taps, 288 bias.
    # NOTE: the kron(eye(BN), .) block-diagonal weight grows as (B*N)^2 — fine at
    # BN=6, but switch to a per-sample batched formulation before scaling B*N
    # (v7x only has 64 MiB physical VMEM).
    b_eff = (params["w_indiv"][0] * (params["ti_b"] + params["tir_b"])
             + params["w_social"][0] * (params["ts_b"] + params["tsr_b"]))     # [12]
    wt_slab = jnp.concatenate([
        _temporal_block(params["ti_w"], params["tir_w"], params["w_indiv"][0]),
        _temporal_block(params["ts_w"], params["tsr_w"], params["w_social"][0]),
        jnp.tile(b_eff, (BN,)).reshape(1, OUT_ROWS),
    ], axis=0).astype(jnp.float32)                                             # [289,72]

    scalars = params["w_noise"].astype(jnp.float32).reshape(1)
    return scalars, ws_slab, wt_slab


# --------------------------------- wrapper -----------------------------------
def _to_channel_major(x):
    # [B, C, N, T] -> [C, B*N*T]  (cols ordered (b, n, t) == torch permute+flatten)
    return jnp.transpose(x, (1, 0, 2, 3)).reshape(x.shape[1], ROWS)


@jax.jit
def rule_network_forward(packed, obs_vel, contxt_vel, noise):
    scalars, ws_slab, wt_slab = packed
    # single packed activation slab -> one VMEM DMA
    act = jnp.concatenate([_to_channel_major(obs_vel),
                           _to_channel_major(contxt_vel),
                           _to_channel_major(noise)], axis=0)                   # [16,48]

    pred = pl.pallas_call(
        rule_network_kernel,
        out_shape=jax.ShapeDtypeStruct((SLOT_DIM, OUT_ROWS), jnp.float32),
        in_specs=[
            pl.BlockSpec(memory_space=pltpu.MemorySpace.SMEM),   # w_noise scalar
            pl.BlockSpec(memory_space=pltpu.MemorySpace.VMEM),   # activation slab
            pl.BlockSpec(memory_space=pltpu.MemorySpace.VMEM),   # spatial W|b slab
            pl.BlockSpec(memory_space=pltpu.MemorySpace.VMEM),   # temporal W|b slab
        ],
        out_specs=pl.BlockSpec(memory_space=pltpu.MemorySpace.VMEM),
        cost_estimate=pl.CostEstimate(flops=_FLOPS, transcendentals=0,
                                      bytes_accessed=_BYTES),
    )(scalars, act, ws_slab, wt_slab)

    # [slot_dim, (sample, out_ch)] -> [B*N, out_ch, slot_dim]
    return jnp.transpose(pred.reshape(SLOT_DIM, BN, TEMPORAL_OUT), (1, 2, 0))


# ----------------------------- pure-JAX reference ----------------------------
def rule_network_reference(params, obs_vel, contxt_vel, noise):
    def conv(x, w, b, pad):  # x:[N,C,L] w:[O,I,K]
        y = jax.lax.conv_general_dilated(x, w, (1,), [(pad, pad)],
                                         dimension_numbers=('NCH', 'OIH', 'NCH'))
        return y + b[None, :, None]

    w_noise = params["w_noise"][0]
    obs = obs_vel + noise * w_noise
    obs = jnp.transpose(obs, (0, 2, 1, 3)).reshape(BN, C_OBS, T)
    nz_rep = jnp.tile(noise, (1, CONTXT_K, 1, 1))
    ctx = contxt_vel + nz_rep * w_noise
    ctx = jnp.transpose(ctx, (0, 2, 1, 3)).reshape(BN, C_CTX, T)
    comb = jnp.concatenate([obs, ctx], axis=1)

    sp_i = jax.nn.relu(conv(obs, params["si_w"], params["si_b"], 1)) \
        + conv(obs, params["sir_w"], params["sir_b"], 0)
    t_i = jnp.transpose(sp_i, (0, 2, 1))
    indiv = conv(t_i, params["ti_w"], params["ti_b"], 1) \
        + conv(t_i, params["tir_w"], params["tir_b"], 0)

    sp_s = jax.nn.relu(conv(comb, params["ss_w"], params["ss_b"], 1)) \
        + conv(comb, params["ssr_w"], params["ssr_b"], 0)
    t_s = jnp.transpose(sp_s, (0, 2, 1))
    social = conv(t_s, params["ts_w"], params["ts_b"], 1) \
        + conv(t_s, params["tsr_w"], params["tsr_b"], 0)

    return params["w_indiv"][0] * indiv + params["w_social"][0] * social


# ------------------------------------ main -----------------------------------
if __name__ == "__main__":
    key = jax.random.PRNGKey(0)
    ks = jax.random.split(key, 24)

    def rnd(k, shape, scale=0.1):
        return (scale * jax.random.normal(k, shape)).astype(jnp.float32)

    params = {
        # embedding exists in the module but is unused in forward()
        "embedding": rnd(ks[0], (RULE_ATTN_DK,)),
        "w_indiv": rnd(ks[1], (1,), 1.0),
        "w_social": rnd(ks[2], (1,), 1.0),
        "w_noise": rnd(ks[3], (1,), 1.0),
        # spatial social convs (in = slot_dim*(contxt_k+1))
        "ss_w": rnd(ks[4], (SLOT_DIM, C_COMB, 3)),  "ss_b": rnd(ks[5], (SLOT_DIM,)),
        "ssr_w": rnd(ks[6], (SLOT_DIM, C_COMB, 1)), "ssr_b": rnd(ks[7], (SLOT_DIM,)),
        # temporal social convs (in = temporal_input_dim = T)
        "ts_w": rnd(ks[8], (TEMPORAL_OUT, T, 3)),   "ts_b": rnd(ks[9], (TEMPORAL_OUT,)),
        "tsr_w": rnd(ks[10], (TEMPORAL_OUT, T, 1)), "tsr_b": rnd(ks[11], (TEMPORAL_OUT,)),
        # spatial individual convs (in = slot_dim)
        "si_w": rnd(ks[12], (SLOT_DIM, SLOT_DIM, 3)),  "si_b": rnd(ks[13], (SLOT_DIM,)),
        "sir_w": rnd(ks[14], (SLOT_DIM, SLOT_DIM, 1)), "sir_b": rnd(ks[15], (SLOT_DIM,)),
        # temporal individual convs
        "ti_w": rnd(ks[16], (TEMPORAL_OUT, T, 3)),   "ti_b": rnd(ks[17], (TEMPORAL_OUT,)),
        "tir_w": rnd(ks[18], (TEMPORAL_OUT, T, 1)),  "tir_b": rnd(ks[19], (TEMPORAL_OUT,)),
    }

    obs_vel = rnd(ks[20], (B, C_OBS, N_AGENTS, T), 1.0)
    contxt_vel = rnd(ks[21], (B, C_CTX, N_AGENTS, T), 1.0)
    noise = rnd(ks[22], (B, C_OBS, N_AGENTS, T), 1.0)

    # weight packing happens ONCE, outside the per-call hot path
    packed = pack_rule_network_params(params)

    out = rule_network_forward(packed, obs_vel, contxt_vel, noise)
    out = jax.block_until_ready(out)

    ref = jax.block_until_ready(rule_network_reference(params, obs_vel, contxt_vel, noise))
    np.testing.assert_allclose(np.asarray(out), np.asarray(ref), rtol=1e-4, atol=1e-4)

    print("KERNEL_OK")
</pallas_src>

<mosaic_0001>
module attributes {stable_mosaic.version = 11 : i64} {
  func.func @rule_network_kernel(%arg0: memref<1xf32, #tpu.memory_space<smem>>, %arg1: memref<16x48xf32, #tpu.memory_space<vmem>>, %arg2: memref<16x37xf32, #tpu.memory_space<vmem>>, %arg3: memref<289x72xf32, #tpu.memory_space<vmem>>, %arg4: memref<4x72xf32, #tpu.memory_space<vmem>>) attributes {dimension_semantics = [], scalar_prefetch = 0 : i64, scratch_operands = 0 : i64, tpu.core_type = #tpu.core_type<tc>} {
    %c0 = arith.constant 0 : index
    %0 = memref.load %arg0[%c0] : memref<1xf32, #tpu.memory_space<smem>>
    %c0_0 = arith.constant 0 : index
    %c0_1 = arith.constant 0 : index
    %1 = vector.load %arg1[%c0_0, %c0_1] : memref<16x48xf32, #tpu.memory_space<vmem>>, vector<16x48xf32>
    %2 = vector.extract_strided_slice %1 {offsets = [0, 0], sizes = [4, 48], strides = [1, 1]} : vector<16x48xf32> to vector<4x48xf32>
    %3 = vector.extract_strided_slice %1 {offsets = [4, 0], sizes = [8, 48], strides = [1, 1]} : vector<16x48xf32> to vector<8x48xf32>
    %4 = vector.extract_strided_slice %1 {offsets = [12, 0], sizes = [4, 48], strides = [1, 1]} : vector<16x48xf32> to vector<4x48xf32>
    %5 = vector.broadcast %0 : f32 to vector<4x48xf32>
    %6 = arith.mulf %4, %5 : vector<4x48xf32>
    %7 = arith.addf %2, %6 : vector<4x48xf32>
    %8 = tpu.concatenate %6, %6 in 0 : vector<4x48xf32>, vector<4x48xf32> -> vector<8x48xf32>
    %9 = arith.addf %3, %8 : vector<8x48xf32>
    %10 = tpu.concatenate %7, %9 in 0 : vector<4x48xf32>, vector<8x48xf32> -> vector<12x48xf32>
    %11 = tpu.iota {dimensions = array<i32: 1>} : vector<12x48xi32>
    %c8_i32 = arith.constant 8 : i32
    %c0_i32 = arith.constant 0 : i32
    %12 = arith.cmpi eq, %c8_i32, %c0_i32 : i32
    %c1_i32 = arith.constant 1 : i32
    %13 = arith.select %12, %c1_i32, %c8_i32 : i32
    %14 = vector.broadcast %13 : i32 to vector<12x48xi32>
    %15 = arith.remsi %11, %14 : vector<12x48xi32>
    %c0_i32_2 = arith.constant 0 : i32
    %16 = vector.broadcast %c0_i32_2 : i32 to vector<12x48xi32>
    %17 = arith.cmpi ne, %15, %16 : vector<12x48xi32>
    %c0_i32_3 = arith.constant 0 : i32
    %18 = vector.broadcast %c0_i32_3 : i32 to vector<12x48xi32>
    %19 = arith.cmpi slt, %15, %18 : vector<12x48xi32>
    %c0_i32_4 = arith.constant 0 : i32
    %20 = arith.cmpi slt, %13, %c0_i32_4 : i32
    %21 = vector.broadcast %20 : i1 to vector<12x48xi1>
    %22 = vector.broadcast %21 : vector<12x48xi1> to vector<12x48xi1>
    %23 = arith.xori %19, %22 : vector<12x48xi1>
    %24 = arith.andi %23, %17 : vector<12x48xi1>
    %25 = vector.broadcast %13 : i32 to vector<12x48xi32>
    %26 = arith.addi %15, %25 : vector<12x48xi32>
    %27 = arith.select %24, %26, %15 : vector<12x48xi1>, vector<12x48xi32>
    %cst = arith.constant 0.000000e+00 : f32
    %28 = vector.broadcast %cst : f32 to vector<12x1xf32>
    %c0_i32_5 = arith.constant 0 : i32
    %29 = vector.broadcast %c0_i32_5 : i32 to vector<12x48xi32>
    %30 = arith.cmpi ne, %27, %29 : vector<12x48xi32>
    %31 = vector.extract_strided_slice %10 {offsets = [0, 0], sizes = [12, 47], strides = [1, 1]} : vector<12x48xf32> to vector<12x47xf32>
    %32 = tpu.concatenate %28, %31 in 1 : vector<12x1xf32>, vector<12x47xf32> -> vector<12x48xf32>
    %cst_6 = arith.constant 0.000000e+00 : f32
    %33 = vector.broadcast %cst_6 : f32 to vector<12x48xf32>
    %34 = arith.select %30, %32, %33 : vector<12x48xi1>, vector<12x48xf32>
    %c7_i32 = arith.constant 7 : i32
    %35 = vector.broadcast %c7_i32 : i32 to vector<12x48xi32>
    %36 = arith.cmpi ne, %27, %35 : vector<12x48xi32>
    %37 = vector.extract_strided_slice %10 {offsets = [0, 1], sizes = [12, 47], strides = [1, 1]} : vector<12x48xf32> to vector<12x47xf32>
    %38 = tpu.concatenate %37, %28 in 1 : vector<12x47xf32>, vector<12x1xf32> -> vector<12x48xf32>
    %cst_7 = arith.constant 0.000000e+00 : f32
    %39 = vector.broadcast %cst_7 : f32 to vector<12x48xf32>
    %40 = arith.select %36, %38, %39 : vector<12x48xi1>, vector<12x48xf32>
    %cst_8 = arith.constant 1.000000e+00 : f32
    %41 = vector.broadcast %cst_8 : f32 to vector<1x48xf32>
    %42 = tpu.concatenate %34, %10, %40, %41 in 0 : vector<12x48xf32>, vector<12x48xf32>, vector<12x48xf32>, vector<1x48xf32> -> vector<37x48xf32>
    %c0_9 = arith.constant 0 : index
    %c0_10 = arith.constant 0 : index
    %43 = vector.load %arg2[%c0_9, %c0_10] : memref<16x37xf32, #tpu.memory_space<vmem>>, vector<16x37xf32>
    %cst_11 = arith.constant dense<0.000000e+00> : vector<16x48xf32>
    %44 = tpu.matmul %43, %42, %cst_11 {dimension_numbers = #tpu.dot_dimension_numbers<[1], [0], [0], [1], [0, 0, 1, 1], [], []>} : vector<16x37xf32>, vector<37x48xf32>, vector<16x48xf32> -> vector<16x48xf32>
    %45 = vector.extract_strided_slice %44 {offsets = [0, 0], sizes = [8, 48], strides = [1, 1]} : vector<16x48xf32> to vector<8x48xf32>
    %cst_12 = arith.constant 0.000000e+00 : f32
    %46 = vector.broadcast %cst_12 : f32 to vector<8x48xf32>
    %47 = arith.maximumf %45, %46 : vector<8x48xf32>
    %48 = vector.extract_strided_slice %44 {offsets = [8, 0], sizes = [8, 48], strides = [1, 1]} : vector<16x48xf32> to vector<8x48xf32>
    %49 = arith.addf %47, %48 : vector<8x48xf32>
    %50 = tpu.iota {dimensions = array<i32: 0>} : vector<8x48xi32>
    %c4_i32 = arith.constant 4 : i32
    %c0_i32_13 = arith.constant 0 : i32
    %51 = arith.cmpi eq, %c4_i32, %c0_i32_13 : i32
    %c1_i32_14 = arith.constant 1 : i32
    %52 = arith.select %51, %c1_i32_14, %c4_i32 : i32
    %53 = vector.broadcast %52 : i32 to vector<8x48xi32>
    %54 = arith.remsi %50, %53 : vector<8x48xi32>
    %c0_i32_15 = arith.constant 0 : i32
    %55 = vector.broadcast %c0_i32_15 : i32 to vector<8x48xi32>
    %56 = arith.cmpi ne, %54, %55 : vector<8x48xi32>
    %c0_i32_16 = arith.constant 0 : i32
    %57 = vector.broadcast %c0_i32_16 : i32 to vector<8x48xi32>
    %58 = arith.cmpi slt, %54, %57 : vector<8x48xi32>
    %c0_i32_17 = arith.constant 0 : i32
    %59 = arith.cmpi slt, %52, %c0_i32_17 : i32
    %60 = vector.broadcast %59 : i1 to vector<8x48xi1>
    %61 = vector.broadcast %60 : vector<8x48xi1> to vector<8x48xi1>
    %62 = arith.xori %58, %61 : vector<8x48xi1>
    %63 = arith.andi %62, %56 : vector<8x48xi1>
    %64 = vector.broadcast %52 : i32 to vector<8x48xi32>
    %65 = arith.addi %54, %64 : vector<8x48xi32>
    %66 = arith.select %63, %65, %54 : vector<8x48xi1>, vector<8x48xi32>
    %cst_18 = arith.constant 0.000000e+00 : f32
    %67 = vector.broadcast %cst_18 : f32 to vector<1x48xf32>
    %c0_i32_19 = arith.constant 0 : i32
    %68 = vector.broadcast %c0_i32_19 : i32 to vector<8x48xi32>
    %69 = arith.cmpi ne, %66, %68 : vector<8x48xi32>
    %70 = vector.extract_strided_slice %49 {offsets = [0, 0], sizes = [7, 48], strides = [1, 1]} : vector<8x48xf32> to vector<7x48xf32>
    %71 = tpu.concatenate %67, %70 in 0 : vector<1x48xf32>, vector<7x48xf32> -> vector<8x48xf32>
    %cst_20 = arith.constant 0.000000e+00 : f32
    %72 = vector.broadcast %cst_20 : f32 to vector<8x48xf32>
    %73 = arith.select %69, %71, %72 : vector<8x48xi1>, vector<8x48xf32>
    %c3_i32 = arith.constant 3 : i32
    %74 = vector.broadcast %c3_i32 : i32 to vector<8x48xi32>
    %75 = arith.cmpi ne, %66, %74 : vector<8x48xi32>
    %76 = vector.extract_strided_slice %49 {offsets = [1, 0], sizes = [7, 48], strides = [1, 1]} : vector<8x48xf32> to vector<7x48xf32>
    %77 = tpu.concatenate %76, %67 in 0 : vector<7x48xf32>, vector<1x48xf32> -> vector<8x48xf32>
    %cst_21 = arith.constant 0.000000e+00 : f32
    %78 = vector.broadcast %cst_21 : f32 to vector<8x48xf32>
    %79 = arith.select %75, %77, %78 : vector<8x48xi1>, vector<8x48xf32>
    %80 = vector.extract_strided_slice %73 {offsets = [0, 0], sizes = [4, 48], strides = [1, 1]} : vector<8x48xf32> to vector<4x48xf32>
    %81 = vector.extract_strided_slice %49 {offsets = [0, 0], sizes = [4, 48], strides = [1, 1]} : vector<8x48xf32> to vector<4x48xf32>
    %82 = vector.extract_strided_slice %79 {offsets = [0, 0], sizes = [4, 48], strides = [1, 1]} : vector<8x48xf32> to vector<4x48xf32>
    %83 = vector.extract_strided_slice %73 {offsets = [4, 0], sizes = [4, 48], strides = [1, 1]} : vector<8x48xf32> to vector<4x48xf32>
    %84 = vector.extract_strided_slice %49 {offsets = [4, 0], sizes = [4, 48], strides = [1, 1]} : vector<8x48xf32> to vector<4x48xf32>
    %85 = vector.extract_strided_slice %79 {offsets = [4, 0], sizes = [4, 48], strides = [1, 1]} : vector<8x48xf32> to vector<4x48xf32>
    %c0_22 = arith.constant 0 : index
    %c0_23 = arith.constant 0 : index
    %86 = vector.load %arg3[%c0_22, %c0_23] : memref<289x72xf32, #tpu.memory_space<vmem>>, vector<48x72xf32>
    %cst_24 = arith.constant dense<0.000000e+00> : vector<4x72xf32>
    %87 = tpu.matmul %80, %86, %cst_24 {dimension_numbers = #tpu.dot_dimension_numbers<[1], [0], [0], [1], [0, 0, 1, 1], [], []>} : vector<4x48xf32>, vector<48x72xf32>, vector<4x72xf32> -> vector<4x72xf32>
    %c48 = arith.constant 48 : index
    %c0_25 = arith.constant 0 : index
    %88 = vector.load %arg3[%c48, %c0_25] : memref<289x72xf32, #tpu.memory_space<vmem>>, vector<48x72xf32>
    %cst_26 = arith.constant dense<0.000000e+00> : vector<4x72xf32>
    %89 = tpu.matmul %81, %88, %cst_26 {dimension_numbers = #tpu.dot_dimension_numbers<[1], [0], [0], [1], [0, 0, 1, 1], [], []>} : vector<4x48xf32>, vector<48x72xf32>, vector<4x72xf32> -> vector<4x72xf32>
    %90 = arith.addf %87, %89 : vector<4x72xf32>
    %c96 = arith.constant 96 : index
    %c0_27 = arith.constant 0 : index
    %91 = vector.load %arg3[%c96, %c0_27] : memref<289x72xf32, #tpu.memory_space<vmem>>, vector<48x72xf32>
    %cst_28 = arith.constant dense<0.000000e+00> : vector<4x72xf32>
    %92 = tpu.matmul %82, %91, %cst_28 {dimension_numbers = #tpu.dot_dimension_numbers<[1], [0], [0], [1], [0, 0, 1, 1], [], []>} : vector<4x48xf32>, vector<48x72xf32>, vector<4x72xf32> -> vector<4x72xf32>
    %93 = arith.addf %90, %92 : vector<4x72xf32>
    %c144 = arith.constant 144 : index
    %c0_29 = arith.constant 0 : index
    %94 = vector.load %arg3[%c144, %c0_29] : memref<289x72xf32, #tpu.memory_space<vmem>>, vector<48x72xf32>
    %cst_30 = arith.constant dense<0.000000e+00> : vector<4x72xf32>
    %95 = tpu.matmul %83, %94, %cst_30 {dimension_numbers = #tpu.dot_dimension_numbers<[1], [0], [0], [1], [0, 0, 1, 1], [], []>} : vector<4x48xf32>, vector<48x72xf32>, vector<4x72xf32> -> vector<4x72xf32>
    %96 = arith.addf %93, %95 : vector<4x72xf32>
    %c192 = arith.constant 192 : index
    %c0_31 = arith.constant 0 : index
    %97 = vector.load %arg3[%c192, %c0_31] : memref<289x72xf32, #tpu.memory_space<vmem>>, vector<48x72xf32>
    %cst_32 = arith.constant dense<0.000000e+00> : vector<4x72xf32>
    %98 = tpu.matmul %84, %97, %cst_32 {dimension_numbers = #tpu.dot_dimension_numbers<[1], [0], [0], [1], [0, 0, 1, 1], [], []>} : vector<4x48xf32>, vector<48x72xf32>, vector<4x72xf32> -> vector<4x72xf32>
    %99 = arith.addf %96, %98 : vector<4x72xf32>
    %c240 = arith.constant 240 : index
    %c0_33 = arith.constant 0 : index
    %100 = vector.load %arg3[%c240, %c0_33] : memref<289x72xf32, #tpu.memory_space<vmem>>, vector<48x72xf32>
    %cst_34 = arith.constant dense<0.000000e+00> : vector<4x72xf32>
    %101 = tpu.matmul %85, %100, %cst_34 {dimension_numbers = #tpu.dot_dimension_numbers<[1], [0], [0], [1], [0, 0, 1, 1], [], []>} : vector<4x48xf32>, vector<48x72xf32>, vector<4x72xf32> -> vector<4x72xf32>
    %102 = arith.addf %99, %101 : vector<4x72xf32>
    %c288 = arith.constant 288 : index
    %c0_35 = arith.constant 0 : index
    %103 = vector.load %arg3[%c288, %c0_35] : memref<289x72xf32, #tpu.memory_space<vmem>>, vector<1x72xf32>
    %104 = vector.broadcast %103 : vector<1x72xf32> to vector<4x72xf32>
    %105 = arith.addf %102, %104 : vector<4x72xf32>
    %c0_36 = arith.constant 0 : index
    %c0_37 = arith.constant 0 : index
    %106 = vector.load %arg4[%c0_36, %c0_37] : memref<4x72xf32, #tpu.memory_space<vmem>>, vector<4x72xf32>
    tpu.vector_store %arg4[%c0_36, %c0_37], %105 {strides = array<i32>} : memref<4x72xf32, #tpu.memory_space<vmem>>, vector<4x72xf32>,
    return
  }
}

</mosaic_0001>

<llo_original>
// kernel: rule_network_forward.1
$region0: #{rule_network_forward.1}
  #allocation0 [shape = 'u32[]', space=smem, size = 0x4, offset = 0x4, fixed_abs, tag = 'smem constant byte address 0x4 - core index']
  #allocation1 [shape = 'u32[144,128]{1,0:T(1,128)}', space=vmem, size = 0x12000, scoped, tag = 'internal scratch']
  #allocation2 [shape = 'f32[1]{0:T(128)S(6)}', space=smem, size = 0x200, scoped, tag = 'scoped memory for rule_network_forward.1']
  %s0 = inlined_call_operand.<no memory space> [shape: f32[1], index: 0, kind: input, shape index: {}]
  %s1 = inlined_call_operand.vmem [shape: f32[16,48], index: 1, kind: input, shape index: {}]
  %s2 = inlined_call_operand.vmem [shape: f32[16,37], index: 2, kind: input, shape index: {}]
  %s3 = inlined_call_operand.vmem [shape: f32[289,72], index: 3, kind: input, shape index: {}]
  %s4 = inlined_call_operand.vmem [shape: f32[4,72], index: 4, kind: output, shape index: {}]
  %s5 = sld [smem:[#allocation0]]
  $region26: #{rule_network_forward.1} parent=0
    _
  %s7 = ssub.s32 1, %s5
  %s8 = scalar_select 0, %s7, %s5
  %9 = sst [smem:[#allocation2]] %s0
  // Predicated region
  $region2: #{rule_network_forward.1} parent=0 // pred_check
    _
  $region3: #{rule_network_forward.1} parent=0 // pred_check_branch
    %11 = sbr.rel (0) target = $region5
  $region4: #{rule_network_forward.1} parent=0 // pred_region
    _
  $region5: #{rule_network_forward.1} parent=0 // pred_fallthru
    _
  // Predicated region
  $region6: #{rule_network_forward.1} parent=0 // pred_check
    _
  $region7: #{rule_network_forward.1} parent=0 // pred_check_branch
    %13 = sbr.rel (0) target = $region9
  $region8: #{rule_network_forward.1} parent=0 // pred_region
    _
  $region9: #{rule_network_forward.1} parent=0 // pred_fallthru
    _
  // Predicated region
  $region10: #{rule_network_forward.1} parent=0 // pred_check
    _
  $region11: #{rule_network_forward.1} parent=0 // pred_check_branch
    %15 = sbr.rel (0) target = $region13
  $region12: #{rule_network_forward.1} parent=0 // pred_region
    _
  $region13: #{rule_network_forward.1} parent=0 // pred_fallthru
    _
  // Predicated region
  $region14: #{rule_network_forward.1} parent=0 // pred_check
    _
  $region15: #{rule_network_forward.1} parent=0 // pred_check_branch
    %17 = sbr.rel (0) target = $region17
  $region16: #{rule_network_forward.1} parent=0 // pred_region
    _
  $region17: #{rule_network_forward.1} parent=0 // pred_fallthru
    _
  %s18 = sld [smem:[#allocation2]]
  %v19 = vld [vmem:[%s1] sm:$0xff]
  %v20 = vld [vmem:[%s1 + $0x8] sm:$0xff]
  %v21 = vstv %s18
  %v22 = vmul.f32 %v20, %v21
  %v24 = vrot.slane %v22, 4
  %v26 = vadd.f32 %v19, %v24
  %vm27 = vcmask 1043456
  %v28 = vsel %vm27, %v24, %v22
  %v30 = vrot.slane %v28, 4
  %v32 = vadd.f32 %v19, %v30
  %v33 = vadd.f32 %v20, %v30
  %v34 = vsel %vm27, %v26, %v32
  %v35 = vlaneseq
  %v36 = vand.u32 %v35, 127
  %vm37 = vcmp.lt.s32.totalorder %v36, 0
  %v38 = vsub.s32 0, %v36
  %v39 = vsel %vm37, %v38, %v36
  %v40 = vshrl.u32 %v39, 3
  %v41 = vand.u32 %v39, 7
  %v42 = vsub.s32 0, %v41
  %v43 = vsel %vm37, %v42, %v41
  %vm44 = vcmp.ne.s32.totalorder %v43, 0
  %vm45 = vcmp.lt.s32.totalorder %v43, 0
  %vm46 = vmand %vm45, %vm44
  %v47 = vadd.s32 %v43, 8
  %v48 = vsel %vm46, %v47, %v43
  %vm49 = vcmp.ne.s32.totalorder %v48, 0
  %52 = vrot.lane.b32.xlu0 %v34, 1
  %v53 = vpop.permute.xlu0 %52
  %54 = vrot.lane.b32.xlu0 %v33, 1
  %v55 = vpop.permute.xlu0 %54
  %vm58 = vcmask 7168
  %v59 = vsel %vm58, 0.0, %v53
  %v60 = vsel %vm58, 0.0, %v55
  %v61 = vsel %vm49, %v59, 0.0
  %v62 = vsel %vm49, %v60, 0.0
  %vm63 = vcmp.ne.s32.totalorder %v48, 7
  %64 = vrot.lane.b32.xlu0 %v34, 127
  %v65 = vpop.permute.xlu0 %64
  %66 = vrot.lane.b32.xlu0 %v33, 127
  %v67 = vpop.permute.xlu0 %66
  %vm70 = vcmask 384000
  %v71 = vsel %vm70, %v65, 0.0
  %v72 = vsel %vm70, %v67, 0.0
  %v73 = vsel %vm63, %v71, 0.0
  %v74 = vsel %vm63, %v72, 0.0
  %v75 = vrot.slane %v34, 4
  %v76 = vrot.slane %v33, 4
  %v77 = vsel %vm27, %v75, %v76
  %v80 = vsel %vm27, %v62, %v75
  %v81 = vsel %vm27, %v74, 1.0
  %v82 = vld [vmem:[%s2] sm:$0xff]
  %v83 = vld [vmem:[%s2 + $0x8] sm:$0xff]
  %vm84 = vcmask 302080
  %v86 = vsel %vm84, %v82, 0
  %v89 = vsel %vm84, %v83, 0
  %vm91 = vcmask 1044480
  %v93 = vsel %vm91, %v81, 0
  %95 = vmatprep.subr.mxu0 0.0
  %96 = vmatpush1.msra.mxu0 0.0
  %97 = vmatprep.subr.mxu0 0.0
  %98 = vmatpush1.msra.mxu0 0.0
  %99 = vmatprep.subr.mxu0 0.0
  %100 = vmatpush1.msra.mxu0 0.0
  %101 = vmatprep.subr.mxu0 0.0
  %102 = vmatpush1.msra.mxu0 0.0
  %103 = vmatprep.subr.mxu0 0.0
  %104 = vmatpush1.msra.mxu0 0.0
  %105 = vmatprep.subr.mxu0 0.0
  %106 = vmatpush1.msra.mxu0 0.0
  %107 = vmatprep.subr.mxu0 0.0
  %108 = vmatpush1.msra.mxu0 0.0
  %109 = vmatprep.subr.mxu0 0.0
  %110 = vmatpush1.msra.mxu0 0.0
  %111 = vmatprep.subr.mxu0 0.0
  %112 = vmatpush1.msra.mxu0 0.0
  %113 = vmatprep.subr.mxu0 0.0
  %114 = vmatpush1.msra.mxu0 0.0
  %115 = vmatprep.subr.mxu0 0.0
  %116 = vmatpush1.msra.mxu0 0.0
  %117 = vmatprep.subr.mxu0 0.0
  %118 = vmatpush1.msra.mxu0 %v93
  %119 = vmatprep.subr.mxu0 0.0
  %120 = vmatpush1.msra.mxu0 %v73
  %121 = vmatprep.subr.mxu0 0.0
  %122 = vmatpush1.msra.mxu0 %v77
  %123 = vmatprep.subr.mxu0 0.0
  %124 = vmatpush1.msra.mxu0 %v80
  %125 = vmatprep.subr.mxu0 0.0
  %126 = vmatpush1.msra.mxu0 %v61
  %127 = vmatprep.subr.mxu0 0.0
  %128 = vmatpush2.msra.mxu0 0.0
  %129 = vmatprep.subr.mxu0 0.0
  %130 = vmatpush2.msra.mxu0 0.0
  %131 = vmatprep.subr.mxu0 0.0
  %132 = vmatpush2.msra.mxu0 0.0
  %133 = vmatprep.subr.mxu0 0.0
  %134 = vmatpush2.msra.mxu0 0.0
  %135 = vmatprep.subr.mxu0 0.0
  %136 = vmatpush2.msra.mxu0 0.0
  %137 = vmatprep.subr.mxu0 0.0
  %138 = vmatpush2.msra.mxu0 0.0
  %139 = vmatprep.subr.mxu0 0.0
  %140 = vmatpush2.msra.mxu0 0.0
  %141 = vmatprep.subr.mxu0 0.0
  %142 = vmatpush2.msra.mxu0 0.0
  %143 = vmatprep.subr.mxu0 0.0
  %144 = vmatpush2.msra.mxu0 0.0
  %145 = vmatprep.subr.mxu0 0.0
  %146 = vmatpush2.msra.mxu0 0.0
  %147 = vmatprep.subr.mxu0 0.0
  %148 = vmatpush2.msra.mxu0 0.0
  %149 = vmatprep.subr.mxu0 0.0
  %150 = vmatpush2.msra.mxu0 0.0
  %151 = vmatprep.subr.mxu0 0.0
  %152 = vmatpush2.msra.mxu0 0.0
  %153 = vmatprep.subr.mxu0 0.0
  %154 = vmatpush2.msra.mxu0 0.0
  %155 = vmatprep.subr.mxu0 0.0
  %156 = vmatpush2.msra.mxu0 0.0
  %157 = vmatprep.subr.mxu0 0.0
  %158 = vmatpush2.msra.mxu0 0.0
  %159 = vmatprep.mubr.f32.mxu0 0.0
  %160 = vmatmul.mubr.f32.gmra.mxu0 %v86
  %v161 = vpop.f32.mrf.mxu0
  %v162 = vadd.f32 0.0, %v161
  %v163 = vpop.f32.mrf.mxu0
  %164 = vmatprep.mubr.f32.mxu0 0.0
  %165 = vmatmul.mubr.f32.gmra.mxu0 %v89
  %v166 = vpop.f32.mrf.mxu0
  %v167 = vadd.f32 0.0, %v166
  %v168 = vpop.f32.mrf.mxu0
  %169 = vdwg.mxu0
  %v170 = vmax.f32 %v162, 0.0
  %v171 = vadd.f32 %v170, %v167
  %v172 = vlaneseq
  %v173 = vshrl.u32 %v172, 7
  %vm174 = vcmp.lt.s32.totalorder %v173, 0
  %v175 = vsub.s32 0, %v173
  %v176 = vsel %vm174, %v175, %v173
  %v177 = vshrl.u32 %v176, 2
  %v178 = vand.u32 %v176, 3
  %v179 = vsub.s32 0, %v178
  %v180 = vsel %vm174, %v179, %v178
  %vm181 = vcmp.ne.s32.totalorder %v180, 0
  %vm182 = vcmp.lt.s32.totalorder %v180, 0
  %vm183 = vmand %vm182, %vm181
  %v184 = vadd.s32 %v180, 4
  %v185 = vsel %vm183, %v184, %v180
  %vm186 = vcmp.ne.s32.totalorder %v185, 0
  %v188 = vrot.slane %v171, 7
  %vm190 = vcmask 1040384
  %v191 = vsel %vm190, 0.0, %v188
  %v192 = vsel %vm186, %v191, 0.0
  %vm193 = vcmp.ne.s32.totalorder %v185, 3
  %v194 = vrot.slane %v171, 1
  %vm196 = vcmask 1046528
  %v197 = vsel %vm196, %v194, 0.0
  %v198 = vsel %vm193, %v197, 0.0
  %v199 = vld [vmem:[%s3] sm:$0xff]
  %v200 = vld [vmem:[%s3 + $0x8] sm:$0xff]
  %v201 = vld [vmem:[%s3 + $0x10] sm:$0xff]
  %v202 = vld [vmem:[%s3 + $0x18] sm:$0xff]
  %v203 = vld [vmem:[%s3 + $0x20] sm:$0xff]
  %v204 = vld [vmem:[%s3 + $0x28] sm:$0xff]
  %v205 = vld [vmem:[%s3 + $0x30] sm:$0xff]
  %v206 = vld [vmem:[%s3 + $0x38] sm:$0xff]
  %v207 = vld [vmem:[%s3 + $0x40] sm:$0xff]
  %v208 = vld [vmem:[%s3 + $0x48] sm:$0xff]
  %v209 = vld [vmem:[%s3 + $0x50] sm:$0xff]
  %v210 = vld [vmem:[%s3 + $0x58] sm:$0xff]
  %vm211 = vcmask 392192
  %v212 = vsel %vm211, %v171, 0
  %214 = vmatprep.subr.mxu0 0.0
  %215 = vmatpush1.msra.mxu0 0.0
  %216 = vmatprep.subr.mxu0 0.0
  %217 = vmatpush1.msra.mxu0 0.0
  %218 = vmatprep.subr.mxu0 0.0
  %219 = vmatpush1.msra.mxu0 0.0
  %220 = vmatprep.subr.mxu0 0.0
  %221 = vmatpush1.msra.mxu0 0.0
  %222 = vmatprep.subr.mxu0 0.0
  %223 = vmatpush1.msra.mxu0 0.0
  %224 = vmatprep.subr.mxu0 0.0
  %225 = vmatpush1.msra.mxu0 0.0
  %226 = vmatprep.subr.mxu0 0.0
  %227 = vmatpush1.msra.mxu0 0.0
  %228 = vmatprep.subr.mxu0 0.0
  %229 = vmatpush1.msra.mxu0 0.0
  %230 = vmatprep.subr.mxu0 0.0
  %231 = vmatpush1.msra.mxu0 0.0
  %232 = vmatprep.subr.mxu0 0.0
  %233 = vmatpush1.msra.mxu0 0.0
  %234 = vmatprep.subr.mxu0 0.0
  %235 = vmatpush1.msra.mxu0 %v210
  %236 = vmatprep.subr.mxu0 0.0
  %237 = vmatpush1.msra.mxu0 %v209
  %238 = vmatprep.subr.mxu0 0.0
  %239 = vmatpush1.msra.mxu0 %v208
  %240 = vmatprep.subr.mxu0 0.0
  %241 = vmatpush1.msra.mxu0 %v207
  %242 = vmatprep.subr.mxu0 0.0
  %243 = vmatpush1.msra.mxu0 %v206
  %244 = vmatprep.subr.mxu0 0.0
  %245 = vmatpush1.msra.mxu0 %v205
  %246 = vmatprep.subr.mxu0 0.0
  %247 = vmatpush2.msra.mxu0 0.0
  %248 = vmatprep.subr.mxu0 0.0
  %249 = vmatpush2.msra.mxu0 0.0
  %250 = vmatprep.subr.mxu0 0.0
  %251 = vmatpush2.msra.mxu0 0.0
  %252 = vmatprep.subr.mxu0 0.0
  %253 = vmatpush2.msra.mxu0 0.0
  %254 = vmatprep.subr.mxu0 0.0
  %255 = vmatpush2.msra.mxu0 0.0
  %256 = vmatprep.subr.mxu0 0.0
  %257 = vmatpush2.msra.mxu0 0.0
  %258 = vmatprep.subr.mxu0 0.0
  %259 = vmatpush2.msra.mxu0 0.0
  %260 = vmatprep.subr.mxu0 0.0
  %261 = vmatpush2.msra.mxu0 0.0
  %262 = vmatprep.subr.mxu0 0.0
  %263 = vmatpush2.msra.mxu0 0.0
  %264 = vmatprep.subr.mxu0 0.0
  %265 = vmatpush2.msra.mxu0 0.0
  %266 = vmatprep.subr.mxu0 0.0
  %267 = vmatpush2.msra.mxu0 0.0
  %268 = vmatprep.subr.mxu0 0.0
  %269 = vmatpush2.msra.mxu0 0.0
  %270 = vmatprep.subr.mxu0 0.0
  %271 = vmatpush2.msra.mxu0 0.0
  %272 = vmatprep.subr.mxu0 0.0
  %273 = vmatpush2.msra.mxu0 0.0
  %274 = vmatprep.subr.mxu0 0.0
  %275 = vmatpush2.msra.mxu0 0.0
  %276 = vmatprep.subr.mxu0 0.0
  %277 = vmatpush2.msra.mxu0 0.0
  %278 = vmatprep.mubr.f32.mxu0 0.0
  %279 = vmatmul.mubr.f32.gmra.mxu0 %v212
  %v280 = vpop.f32.mrf.mxu0
  %v281 = vadd.f32 0.0, %v280
  %v282 = vpop.f32.mrf.mxu0
  %283 = vdwg.mxu0
  %v285 = vsel %vm211, %v192, 0
  %287 = vmatprep.subr.mxu0 0.0
  %288 = vmatpush1.msra.mxu0 0.0
  %289 = vmatprep.subr.mxu0 0.0
  %290 = vmatpush1.msra.mxu0 0.0
  %291 = vmatprep.subr.mxu0 0.0
  %292 = vmatpush1.msra.mxu0 0.0
  %293 = vmatprep.subr.mxu0 0.0
  %294 = vmatpush1.msra.mxu0 0.0
  %295 = vmatprep.subr.mxu0 0.0
  %296 = vmatpush1.msra.mxu0 0.0
  %297 = vmatprep.subr.mxu0 0.0
  %298 = vmatpush1.msra.mxu0 0.0
  %299 = vmatprep.subr.mxu0 0.0
  %300 = vmatpush1.msra.mxu0 0.0
  %301 = vmatprep.subr.mxu0 0.0
  %302 = vmatpush1.msra.mxu0 0.0
  %303 = vmatprep.subr.mxu0 0.0
  %304 = vmatpush1.msra.mxu0 0.0
  %305 = vmatprep.subr.mxu0 0.0
  %306 = vmatpush1.msra.mxu0 0.0
  %307 = vmatprep.subr.mxu0 0.0
  %308 = vmatpush1.msra.mxu0 %v204
  %309 = vmatprep.subr.mxu0 0.0
  %310 = vmatpush1.msra.mxu0 %v203
  %311 = vmatprep.subr.mxu0 0.0
  %312 = vmatpush1.msra.mxu0 %v202
  %313 = vmatprep.subr.mxu0 0.0
  %314 = vmatpush1.msra.mxu0 %v201
  %315 = vmatprep.subr.mxu0 0.0
  %316 = vmatpush1.msra.mxu0 %v200
  %317 = vmatprep.subr.mxu0 0.0
  %318 = vmatpush1.msra.mxu0 %v199
  %319 = vmatprep.subr.mxu0 0.0
  %320 = vmatpush2.msra.mxu0 0.0
  %321 = vmatprep.subr.mxu0 0.0
  %322 = vmatpush2.msra.mxu0 0.0
  %323 = vmatprep.subr.mxu0 0.0
  %324 = vmatpush2.msra.mxu0 0.0
  %325 = vmatprep.subr.mxu0 0.0
  %326 = vmatpush2.msra.mxu0 0.0
  %327 = vmatprep.subr.mxu0 0.0
  %328 = vmatpush2.msra.mxu0 0.0
  %329 = vmatprep.subr.mxu0 0.0
  %330 = vmatpush2.msra.mxu0 0.0
  %331 = vmatprep.subr.mxu0 0.0
  %332 = vmatpush2.msra.mxu0 0.0
  %333 = vmatprep.subr.mxu0 0.0
  %334 = vmatpush2.msra.mxu0 0.0
  %335 = vmatprep.subr.mxu0 0.0
  %336 = vmatpush2.msra.mxu0 0.0
  %337 = vmatprep.subr.mxu0 0.0
  %338 = vmatpush2.msra.mxu0 0.0
  %339 = vmatprep.subr.mxu0 0.0
  %340 = vmatpush2.msra.mxu0 0.0
  %341 = vmatprep.subr.mxu0 0.0
  %342 = vmatpush2.msra.mxu0 0.0
  %343 = vmatprep.subr.mxu0 0.0
  %344 = vmatpush2.msra.mxu0 0.0
  %345 = vmatprep.subr.mxu0 0.0
  %346 = vmatpush2.msra.mxu0 0.0
  %347 = vmatprep.subr.mxu0 0.0
  %348 = vmatpush2.msra.mxu0 0.0
  %349 = vmatprep.subr.mxu0 0.0
  %350 = vmatpush2.msra.mxu0 0.0
  %351 = vmatprep.mubr.f32.mxu0 0.0
  %352 = vmatmul.mubr.f32.gmra.mxu0 %v285
  %v353 = vpop.f32.mrf.mxu0
  %v354 = vadd.f32 %v281, %v353
  %v355 = vpop.f32.mrf.mxu0
  %356 = vdwg.mxu0
  %v357 = vld [vmem:[%s3 + $0x60] sm:$0xff]
  %v358 = vld [vmem:[%s3 + $0x68] sm:$0xff]
  %v359 = vld [vmem:[%s3 + $0x70] sm:$0xff]
  %v360 = vld [vmem:[%s3 + $0x78] sm:$0xff]
  %v361 = vld [vmem:[%s3 + $0x80] sm:$0xff]
  %v362 = vld [vmem:[%s3 + $0x88] sm:$0xff]
  %v364 = vsel %vm211, %v198, 0
  %366 = vmatprep.subr.mxu0 0.0
  %367 = vmatpush1.msra.mxu0 0.0
  %368 = vmatprep.subr.mxu0 0.0
  %369 = vmatpush1.msra.mxu0 0.0
  %370 = vmatprep.subr.mxu0 0.0
  %371 = vmatpush1.msra.mxu0 0.0
  %372 = vmatprep.subr.mxu0 0.0
  %373 = vmatpush1.msra.mxu0 0.0
  %374 = vmatprep.subr.mxu0 0.0
  %375 = vmatpush1.msra.mxu0 0.0
  %376 = vmatprep.subr.mxu0 0.0
  %377 = vmatpush1.msra.mxu0 0.0
  %378 = vmatprep.subr.mxu0 0.0
  %379 = vmatpush1.msra.mxu0 0.0
  %380 = vmatprep.subr.mxu0 0.0
  %381 = vmatpush1.msra.mxu0 0.0
  %382 = vmatprep.subr.mxu0 0.0
  %383 = vmatpush1.msra.mxu0 0.0
  %384 = vmatprep.subr.mxu0 0.0
  %385 = vmatpush1.msra.mxu0 0.0
  %386 = vmatprep.subr.mxu0 0.0
  %387 = vmatpush1.msra.mxu0 %v362
  %388 = vmatprep.subr.mxu0 0.0
  %389 = vmatpush1.msra.mxu0 %v361
  %390 = vmatprep.subr.mxu0 0.0
  %391 = vmatpush1.msra.mxu0 %v360
  %392 = vmatprep.subr.mxu0 0.0
  %393 = vmatpush1.msra.mxu0 %v359
  %394 = vmatprep.subr.mxu0 0.0
  %395 = vmatpush1.msra.mxu0 %v358
  %396 = vmatprep.subr.mxu0 0.0
  %397 = vmatpush1.msra.mxu0 %v357
  %398 = vmatprep.subr.mxu0 0.0
  %399 = vmatpush2.msra.mxu0 0.0
  %400 = vmatprep.subr.mxu0 0.0
  %401 = vmatpush2.msra.mxu0 0.0
  %402 = vmatprep.subr.mxu0 0.0
  %403 = vmatpush2.msra.mxu0 0.0
  %404 = vmatprep.subr.mxu0 0.0
  %405 = vmatpush2.msra.mxu0 0.0
  %406 = vmatprep.subr.mxu0 0.0
  %407 = vmatpush2.msra.mxu0 0.0
  %408 = vmatprep.subr.mxu0 0.0
  %409 = vmatpush2.msra.mxu0 0.0
  %410 = vmatprep.subr.mxu0 0.0
  %411 = vmatpush2.msra.mxu0 0.0
  %412 = vmatprep.subr.mxu0 0.0
  %413 = vmatpush2.msra.mxu0 0.0
  %414 = vmatprep.subr.mxu0 0.0
  %415 = vmatpush2.msra.mxu0 0.0
  %416 = vmatprep.subr.mxu0 0.0
  %417 = vmatpush2.msra.mxu0 0.0
  %418 = vmatprep.subr.mxu0 0.0
  %419 = vmatpush2.msra.mxu0 0.0
  %420 = vmatprep.subr.mxu0 0.0
  %421 = vmatpush2.msra.mxu0 0.0
  %422 = vmatprep.subr.mxu0 0.0
  %423 = vmatpush2.msra.mxu0 0.0
  %424 = vmatprep.subr.mxu0 0.0
  %425 = vmatpush2.msra.mxu0 0.0
  %426 = vmatprep.subr.mxu0 0.0
  %427 = vmatpush2.msra.mxu0 0.0
  %428 = vmatprep.subr.mxu0 0.0
  %429 = vmatpush2.msra.mxu0 0.0
  %430 = vmatprep.mubr.f32.mxu0 0.0
  %431 = vmatmul.mubr.f32.gmra.mxu0 %v364
  %v432 = vpop.f32.mrf.mxu0
  %v433 = vadd.f32 0.0, %v432
  %v434 = vpop.f32.mrf.mxu0
  %435 = vdwg.mxu0
  %v436 = vadd.f32 %v354, %v433
  %v437 = vld [vmem:[%s3 + $0x90] sm:$0xff]
  %v438 = vld [vmem:[%s3 + $0x98] sm:$0xff]
  %v439 = vld [vmem:[%s3 + $0xa0] sm:$0xff]
  %v440 = vld [vmem:[%s3 + $0xa8] sm:$0xff]
  %v441 = vld [vmem:[%s3 + $0xb0] sm:$0xff]
  %v442 = vld [vmem:[%s3 + $0xb8] sm:$0xff]
  %v443 = vrot.slane %v192, 4
  %v444 = vsel %vm211, %v443, 0
  %446 = vmatprep.subr.mxu0 0.0
  %447 = vmatpush1.msra.mxu0 0.0
  %448 = vmatprep.subr.mxu0 0.0
  %449 = vmatpush1.msra.mxu0 0.0
  %450 = vmatprep.subr.mxu0 0.0
  %451 = vmatpush1.msra.mxu0 0.0
  %452 = vmatprep.subr.mxu0 0.0
  %453 = vmatpush1.msra.mxu0 0.0
  %454 = vmatprep.subr.mxu0 0.0
  %455 = vmatpush1.msra.mxu0 0.0
  %456 = vmatprep.subr.mxu0 0.0
  %457 = vmatpush1.msra.mxu0 0.0
  %458 = vmatprep.subr.mxu0 0.0
  %459 = vmatpush1.msra.mxu0 0.0
  %460 = vmatprep.subr.mxu0 0.0
  %461 = vmatpush1.msra.mxu0 0.0
  %462 = vmatprep.subr.mxu0 0.0
  %463 = vmatpush1.msra.mxu0 0.0
  %464 = vmatprep.subr.mxu0 0.0
  %465 = vmatpush1.msra.mxu0 0.0
  %466 = vmatprep.subr.mxu0 0.0
  %467 = vmatpush1.msra.mxu0 %v442
  %468 = vmatprep.subr.mxu0 0.0
  %469 = vmatpush1.msra.mxu0 %v441
  %470 = vmatprep.subr.mxu0 0.0
  %471 = vmatpush1.msra.mxu0 %v440
  %472 = vmatprep.subr.mxu0 0.0
  %473 = vmatpush1.msra.mxu0 %v439
  %474 = vmatprep.subr.mxu0 0.0
  %475 = vmatpush1.msra.mxu0 %v438
  %476 = vmatprep.subr.mxu0 0.0
  %477 = vmatpush1.msra.mxu0 %v437
  %478 = vmatprep.subr.mxu0 0.0
  %479 = vmatpush2.msra.mxu0 0.0
  %480 = vmatprep.subr.mxu0 0.0
  %481 = vmatpush2.msra.mxu0 0.0
  %482 = vmatprep.subr.mxu0 0.0
  %483 = vmatpush2.msra.mxu0 0.0
  %484 = vmatprep.subr.mxu0 0.0
  %485 = vmatpush2.msra.mxu0 0.0
  %486 = vmatprep.subr.mxu0 0.0
  %487 = vmatpush2.msra.mxu0 0.0
  %488 = vmatprep.subr.mxu0 0.0
  %489 = vmatpush2.msra.mxu0 0.0
  %490 = vmatprep.subr.mxu0 0.0
  %491 = vmatpush2.msra.mxu0 0.0
  %492 = vmatprep.subr.mxu0 0.0
  %493 = vmatpush2.msra.mxu0 0.0
  %494 = vmatprep.subr.mxu0 0.0
  %495 = vmatpush2.msra.mxu0 0.0
  %496 = vmatprep.subr.mxu0 0.0
  %497 = vmatpush2.msra.mxu0 0.0
  %498 = vmatprep.subr.mxu0 0.0
  %499 = vmatpush2.msra.mxu0 0.0
  %500 = vmatprep.subr.mxu0 0.0
  %501 = vmatpush2.msra.mxu0 0.0
  %502 = vmatprep.subr.mxu0 0.0
  %503 = vmatpush2.msra.mxu0 0.0
  %504 = vmatprep.subr.mxu0 0.0
  %505 = vmatpush2.msra.mxu0 0.0
  %506 = vmatprep.subr.mxu0 0.0
  %507 = vmatpush2.msra.mxu0 0.0
  %508 = vmatprep.subr.mxu0 0.0
  %509 = vmatpush2.msra.mxu0 0.0
  %510 = vmatprep.mubr.f32.mxu0 0.0
  %511 = vmatmul.mubr.f32.gmra.mxu0 %v444
  %v512 = vpop.f32.mrf.mxu0
  %v513 = vadd.f32 0.0, %v512
  %v514 = vpop.f32.mrf.mxu0
  %515 = vdwg.mxu0
  %v516 = vadd.f32 %v436, %v513
  %v517 = vld [vmem:[%s3 + $0xc0] sm:$0xff]
  %v518 = vld [vmem:[%s3 + $0xc8] sm:$0xff]
  %v519 = vld [vmem:[%s3 + $0xd0] sm:$0xff]
  %v520 = vld [vmem:[%s3 + $0xd8] sm:$0xff]
  %v521 = vld [vmem:[%s3 + $0xe0] sm:$0xff]
  %v522 = vld [vmem:[%s3 + $0xe8] sm:$0xff]
  %v523 = vrot.slane %v171, 4
  %v524 = vsel %vm211, %v523, 0
  %526 = vmatprep.subr.mxu0 0.0
  %527 = vmatpush1.msra.mxu0 0.0
  %528 = vmatprep.subr.mxu0 0.0
  %529 = vmatpush1.msra.mxu0 0.0
  %530 = vmatprep.subr.mxu0 0.0
  %531 = vmatpush1.msra.mxu0 0.0
  %532 = vmatprep.subr.mxu0 0.0
  %533 = vmatpush1.msra.mxu0 0.0
  %534 = vmatprep.subr.mxu0 0.0
  %535 = vmatpush1.msra.mxu0 0.0
  %536 = vmatprep.subr.mxu0 0.0
  %537 = vmatpush1.msra.mxu0 0.0
  %538 = vmatprep.subr.mxu0 0.0
  %539 = vmatpush1.msra.mxu0 0.0
  %540 = vmatprep.subr.mxu0 0.0
  %541 = vmatpush1.msra.mxu0 0.0
  %542 = vmatprep.subr.mxu0 0.0
  %543 = vmatpush1.msra.mxu0 0.0
  %544 = vmatprep.subr.mxu0 0.0
  %545 = vmatpush1.msra.mxu0 0.0
  %546 = vmatprep.subr.mxu0 0.0
  %547 = vmatpush1.msra.mxu0 %v522
  %548 = vmatprep.subr.mxu0 0.0
  %549 = vmatpush1.msra.mxu0 %v521
  %550 = vmatprep.subr.mxu0 0.0
  %551 = vmatpush1.msra.mxu0 %v520
  %552 = vmatprep.subr.mxu0 0.0
  %553 = vmatpush1.msra.mxu0 %v519
  %554 = vmatprep.subr.mxu0 0.0
  %555 = vmatpush1.msra.mxu0 %v518
  %556 = vmatprep.subr.mxu0 0.0
  %557 = vmatpush1.msra.mxu0 %v517
  %558 = vmatprep.subr.mxu0 0.0
  %559 = vmatpush2.msra.mxu0 0.0
  %560 = vmatprep.subr.mxu0 0.0
  %561 = vmatpush2.msra.mxu0 0.0
  %562 = vmatprep.subr.mxu0 0.0
  %563 = vmatpush2.msra.mxu0 0.0
  %564 = vmatprep.subr.mxu0 0.0
  %565 = vmatpush2.msra.mxu0 0.0
  %566 = vmatprep.subr.mxu0 0.0
  %567 = vmatpush2.msra.mxu0 0.0
  %568 = vmatprep.subr.mxu0 0.0
  %569 = vmatpush2.msra.mxu0 0.0
  %570 = vmatprep.subr.mxu0 0.0
  %571 = vmatpush2.msra.mxu0 0.0
  %572 = vmatprep.subr.mxu0 0.0
  %573 = vmatpush2.msra.mxu0 0.0
  %574 = vmatprep.subr.mxu0 0.0
  %575 = vmatpush2.msra.mxu0 0.0
  %576 = vmatprep.subr.mxu0 0.0
  %577 = vmatpush2.msra.mxu0 0.0
  %578 = vmatprep.subr.mxu0 0.0
  %579 = vmatpush2.msra.mxu0 0.0
  %580 = vmatprep.subr.mxu0 0.0
  %581 = vmatpush2.msra.mxu0 0.0
  %582 = vmatprep.subr.mxu0 0.0
  %583 = vmatpush2.msra.mxu0 0.0
  %584 = vmatprep.subr.mxu0 0.0
  %585 = vmatpush2.msra.mxu0 0.0
  %586 = vmatprep.subr.mxu0 0.0
  %587 = vmatpush2.msra.mxu0 0.0
  %588 = vmatprep.subr.mxu0 0.0
  %589 = vmatpush2.msra.mxu0 0.0
  %590 = vmatprep.mubr.f32.mxu0 0.0
  %591 = vmatmul.mubr.f32.gmra.mxu0 %v524
  %v592 = vpop.f32.mrf.mxu0
  %v593 = vadd.f32 0.0, %v592
  %v594 = vpop.f32.mrf.mxu0
  %595 = vdwg.mxu0
  %v596 = vadd.f32 %v516, %v593
  %v597 = vld [vmem:[%s3 + $0xf0] sm:$0xff]
  %v598 = vld [vmem:[%s3 + $0xf8] sm:$0xff]
  %v599 = vld [vmem:[%s3 + $0x100] sm:$0xff]
  %v600 = vld [vmem:[%s3 + $0x108] sm:$0xff]
  %v601 = vld [vmem:[%s3 + $0x110] sm:$0xff]
  %v602 = vld [vmem:[%s3 + $0x118] sm:$0xff]
  %v603 = vrot.slane %v198, 4
  %v604 = vsel %vm211, %v603, 0
  %606 = vmatprep.subr.mxu0 0.0
  %607 = vmatpush1.msra.mxu0 0.0
  %608 = vmatprep.subr.mxu0 0.0
  %609 = vmatpush1.msra.mxu0 0.0
  %610 = vmatprep.subr.mxu0 0.0
  %611 = vmatpush1.msra.mxu0 0.0
  %612 = vmatprep.subr.mxu0 0.0
  %613 = vmatpush1.msra.mxu0 0.0
  %614 = vmatprep.subr.mxu0 0.0
  %615 = vmatpush1.msra.mxu0 0.0
  %616 = vmatprep.subr.mxu0 0.0
  %617 = vmatpush1.msra.mxu0 0.0
  %618 = vmatprep.subr.mxu0 0.0
  %619 = vmatpush1.msra.mxu0 0.0
  %620 = vmatprep.subr.mxu0 0.0
  %621 = vmatpush1.msra.mxu0 0.0
  %622 = vmatprep.subr.mxu0 0.0
  %623 = vmatpush1.msra.mxu0 0.0
  %624 = vmatprep.subr.mxu0 0.0
  %625 = vmatpush1.msra.mxu0 0.0
  %626 = vmatprep.subr.mxu0 0.0
  %627 = vmatpush1.msra.mxu0 %v602
  %628 = vmatprep.subr.mxu0 0.0
  %629 = vmatpush1.msra.mxu0 %v601
  %630 = vmatprep.subr.mxu0 0.0
  %631 = vmatpush1.msra.mxu0 %v600
  %632 = vmatprep.subr.mxu0 0.0
  %633 = vmatpush1.msra.mxu0 %v599
  %634 = vmatprep.subr.mxu0 0.0
  %635 = vmatpush1.msra.mxu0 %v598
  %636 = vmatprep.subr.mxu0 0.0
  %637 = vmatpush1.msra.mxu0 %v597
  %638 = vmatprep.subr.mxu0 0.0
  %639 = vmatpush2.msra.mxu0 0.0
  %640 = vmatprep.subr.mxu0 0.0
  %641 = vmatpush2.msra.mxu0 0.0
  %642 = vmatprep.subr.mxu0 0.0
  %643 = vmatpush2.msra.mxu0 0.0
  %644 = vmatprep.subr.mxu0 0.0
  %645 = vmatpush2.msra.mxu0 0.0
  %646 = vmatprep.subr.mxu0 0.0
  %647 = vmatpush2.msra.mxu0 0.0
  %648 = vmatprep.subr.mxu0 0.0
  %649 = vmatpush2.msra.mxu0 0.0
  %650 = vmatprep.subr.mxu0 0.0
  %651 = vmatpush2.msra.mxu0 0.0
  %652 = vmatprep.subr.mxu0 0.0
  %653 = vmatpush2.msra.mxu0 0.0
  %654 = vmatprep.subr.mxu0 0.0
  %655 = vmatpush2.msra.mxu0 0.0
  %656 = vmatprep.subr.mxu0 0.0
  %657 = vmatpush2.msra.mxu0 0.0
  %658 = vmatprep.subr.mxu0 0.0
  %659 = vmatpush2.msra.mxu0 0.0
  %660 = vmatprep.subr.mxu0 0.0
  %661 = vmatpush2.msra.mxu0 0.0
  %662 = vmatprep.subr.mxu0 0.0
  %663 = vmatpush2.msra.mxu0 0.0
  %664 = vmatprep.subr.mxu0 0.0
  %665 = vmatpush2.msra.mxu0 0.0
  %666 = vmatprep.subr.mxu0 0.0
  %667 = vmatpush2.msra.mxu0 0.0
  %668 = vmatprep.subr.mxu0 0.0
  %669 = vmatpush2.msra.mxu0 0.0
  %670 = vmatprep.mubr.f32.mxu0 0.0
  %671 = vmatmul.mubr.f32.gmra.mxu0 %v604
  %v672 = vpop.f32.mrf.mxu0
  %v673 = vadd.f32 0.0, %v672
  %v674 = vpop.f32.mrf.mxu0
  %675 = vdwg.mxu0
  %v676 = vadd.f32 %v596, %v673
  %v677 = vld [vmem:[%s3 + $0x120] sm:$0x1]
  %v678 = vlaneseq
  %v679 = vshrl.u32 %v678, 7
  %v680 = vsub.s32 0, %v679
  %v681 = vrot.slane %v677, %v680
  %v682 = vadd.f32 %v676, %v681
  %vm683 = vcmask 584704
  %684 = vst.msk [vmem:[%s4] sm:$0xf] %vm683, %v682
  // Predicated region
  $region18: #{rule_network_forward.1} parent=0 // pred_check
    _
  $region19: #{rule_network_forward.1} parent=0 // pred_check_branch
    %686 = sbr.rel (0) target = $region21
  $region20: #{rule_network_forward.1} parent=0 // pred_region
    _
  $region21: #{rule_network_forward.1} parent=0 // pred_fallthru
    _
  // Predicated region
  $region22: #{rule_network_forward.1} parent=0 // pred_check
    _
  $region23: #{rule_network_forward.1} parent=0 // pred_check_branch
    %688 = sbr.rel (0) target = $region25
  $region24: #{rule_network_forward.1} parent=0 // pred_region
    _
  $region25: #{rule_network_forward.1} parent=0 // pred_fallthru
    _

</llo_original>
